<compile_context>
chip_gen: v7x
topology: tpu7x:2x2x1
jax: 0.10.0
libtpu: 0.0.40
codegen_flags: <defaults>
</compile_context>

<pallas_src>
import math

import jax
import jax.numpy as jnp
from jax.experimental import pallas as pl
from jax.experimental.pallas import tpu as pltpu


def _round_up(v, m):
    return ((v + m - 1) // m) * m


def _gelu_tanh(x):
    # GELU, tanh approximation (BERT-style custom GELU module):
    #   0.5 * x * (1 + tanh(sqrt(2/pi) * (x + 0.044715 * x^3)))
    c = math.sqrt(2.0 / math.pi)
    return 0.5 * x * (1.0 + jnp.tanh(c * (x + 0.044715 * x * x * x)))


def _vmem_capacity_bytes():
    # Hardware query only; fall back conservatively if unavailable.
    try:
        return int(pltpu.get_tpu_info().vmem_capacity_bytes)
    except Exception:
        return 64 * 1024 * 1024


def _has_two_tensorcores():
    # 2 TensorCores per chip/device: v4, v5p, v7x.  v5e/v6e are single-core.
    try:
        kind = jax.devices()[0].device_kind.lower()
    except Exception:
        return False
    return any(tag in kind for tag in ("v4", "v5p", "7x", "v7"))


def _default_tile_m(d_in, d_hidden, d_out, x_item, w_item, out_item, ew_item,
                    row_align, budget_bytes):
    # Constant operands: w1, w2 (matmul dtype) + f32 biases, double-buffered
    # (Pallas does not re-DMA them — unchanged block index — but both buffers
    # occupy VMEM).
    weight_bytes = 2 * ((d_in * d_hidden + d_hidden * d_out) * w_item
                        + (d_hidden + d_out) * 4)
    # Per-row VMEM: double-buffered x tile (x dtype) and out tile (out dtype),
    # plus in-kernel intermediates: x cast to matmul dtype, f32 h (acc + bias),
    # gelu(h) in elementwise dtype, f32 y before the output cast.
    per_row = (2 * d_in * x_item
               + 2 * d_out * out_item
               + d_in * w_item
               + d_hidden * 4
               + d_hidden * ew_item
               + d_out * 4)
    per_row = int(per_row * 1.5)  # layout / regalloc margin
    avail = budget_bytes - weight_bytes
    if avail < per_row * row_align:
        # Weights dominate VMEM — degenerate tiny-tile path (see TODO on the
        # hidden-dim grid axis / fp8 weights).
        return row_align
    tile = min(2048, avail // per_row)  # amortize the ~0.35 us/step overhead
    return max(row_align, (tile // row_align) * row_align)


def feed_forward_interaction(x, w1, b1, w2, b2, *, tile_m=None,
                             matmul_dtype=jnp.bfloat16,
                             elementwise_dtype=jnp.float32,
                             vmem_limit_bytes=None):
    """x: [..., d_in]; w1: [d_in, 2*d_in]; b1: [2*d_in]; w2: [2*d_in, d_out]; b2: [d_out]."""
    d_in = x.shape[-1]
    d_hidden = w1.shape[1]
    d_out = w2.shape[1]
    lead = x.shape[:-1]
    m = 1
    for s in lead:
        m *= int(s)

    out_dtype = x.dtype
    mm_dt = jnp.dtype(matmul_dtype)
    ew_dt = jnp.dtype(elementwise_dtype)
    x_item = jnp.dtype(x.dtype).itemsize
    out_item = jnp.dtype(out_dtype).itemsize

    # x is only reshaped (leading-dim collapse is a metadata op — no HBM pass);
    # the bf16 cast of x happens inside the kernel.  Weights/biases are cast once
    # (cheap vs. the activation traffic; fused by XLA when the wrapper is jitted).
    x2d = x.reshape(m, d_in)
    w1c = w1.astype(mm_dt)
    w2c = w2.astype(mm_dt)
    b1c = b1.astype(jnp.float32).reshape(1, d_hidden)
    b2c = b2.astype(jnp.float32).reshape(1, d_out)

    if vmem_limit_bytes is None:
        cap = _vmem_capacity_bytes()
        vmem_limit_bytes = max(32 * 1024 * 1024,
                               min(cap - (8 << 20), int(0.875 * cap)))

    row_align = 8 * max(1, 4 // x_item)  # f32 -> 8, bf16 -> 16, int8/fp8 -> 32
    m_align = _round_up(max(m, 1), row_align)
    if tile_m is None:
        tile_m = _default_tile_m(d_in, d_hidden, d_out, x_item, mm_dt.itemsize,
                                 out_item, ew_dt.itemsize, row_align,
                                 int(0.8 * vmem_limit_bytes))
    tile_m = max(row_align, (int(tile_m) // row_align) * row_align)
    tile_m = min(tile_m, m_align)
    # Only split a single full-M tile into >= 2 grid steps when the chip actually
    # has two TensorCores to shard the parallel axis across.
    if _has_two_tensorcores() and tile_m >= m_align and m_align >= 2 * row_align:
        tile_m = _round_up(-(-m_align // 2), row_align)

    grid = (pl.cdiv(m, tile_m),)  # ragged last tile handled by Pallas (no M pad)

    def _ffn_kernel(x_ref, w1_ref, b1_ref, w2_ref, b2_ref, o_ref):
        # x_ref:  [TM, d_in]      (input dtype; cast to matmul dtype here)
        # w1_ref: [d_in, d_h]     (matmul dtype, resident across grid)
        # b1_ref: [1, d_h]        (f32, resident)
        # w2_ref: [d_h, d_out]    (matmul dtype, resident)
        # b2_ref: [1, d_out]      (f32, resident)
        # o_ref:  [TM, d_out]     (output dtype)
        x_t = x_ref[...].astype(w1_ref.dtype)
        h = jnp.dot(x_t, w1_ref[...], preferred_element_type=jnp.float32)
        h = h + b1_ref[...]
        g = _gelu_tanh(h.astype(ew_dt))
        # dropout (eval mode) == identity
        y = jnp.dot(g.astype(w2_ref.dtype), w2_ref[...],
                    preferred_element_type=jnp.float32)
        y = y + b2_ref[...]
        o_ref[...] = y.astype(o_ref.dtype)

    def const_spec(shape):
        # Constant block index -> Pallas keeps the block resident (no re-DMA).
        return pl.BlockSpec(shape, lambda i: (0, 0))

    flops = 2 * m * (d_in * d_hidden + d_hidden * d_out)
    bytes_accessed = (m * d_in * x_item + m * d_out * out_item
                      + (d_in * d_hidden + d_hidden * d_out) * mm_dt.itemsize
                      + (d_hidden + d_out) * 4)
    cost = pl.CostEstimate(flops=flops, transcendentals=m * d_hidden,
                           bytes_accessed=bytes_accessed)

    out2d = pl.pallas_call(
        _ffn_kernel,
        out_shape=jax.ShapeDtypeStruct((m, d_out), out_dtype),
        grid_spec=pltpu.PrefetchScalarGridSpec(
            num_scalar_prefetch=0,
            grid=grid,
            in_specs=[
                pl.BlockSpec((tile_m, d_in), lambda i: (i, 0)),
                const_spec((d_in, d_hidden)),
                const_spec((1, d_hidden)),
                const_spec((d_hidden, d_out)),
                const_spec((1, d_out)),
            ],
            out_specs=pl.BlockSpec((tile_m, d_out), lambda i: (i, 0)),
        ),
        compiler_params=pltpu.CompilerParams(
            dimension_semantics=("parallel",),
            vmem_limit_bytes=int(vmem_limit_bytes),
        ),
        cost_estimate=cost,
    )(x2d, w1c, b1c, w2c, b2c)

    return out2d.reshape(*lead, d_out)


def _reference(x, w1, b1, w2, b2):
    h = jnp.einsum("...i,ih->...h", x, w1) + b1
    g = _gelu_tanh(h)
    return jnp.einsum("...h,ho->...o", g, w2) + b2


if __name__ == "__main__":
    # Small, module-consistent shapes: batch=2, seq=8, d_in=32, d_out=32.
    batch, seq, d_in, d_out = 2, 8, 32, 32
    d_hidden = 2 * d_in

    key = jax.random.PRNGKey(0)
    kx, k1, kb1, k2, kb2 = jax.random.split(key, 5)

    x = jax.random.normal(kx, (batch, seq, d_in), dtype=jnp.float32)

    # Deterministic synthetic parameters (nn.Linear-like scale), stored already
    # transposed: w1 [d_in, 2*d_in], w2 [2*d_in, d_out].
    bound1 = 1.0 / math.sqrt(d_in)
    bound2 = 1.0 / math.sqrt(d_hidden)
    w1 = jax.random.uniform(k1, (d_in, d_hidden), jnp.float32, -bound1, bound1)
    b1 = jax.random.uniform(kb1, (d_hidden,), jnp.float32, -bound1, bound1)
    w2 = jax.random.uniform(k2, (d_hidden, d_out), jnp.float32, -bound2, bound2)
    b2 = jax.random.uniform(kb2, (d_out,), jnp.float32, -bound2, bound2)

    ref = _reference(x, w1, b1, w2, b2)

    ffn = jax.jit(
        feed_forward_interaction,
        static_argnames=("tile_m", "matmul_dtype", "elementwise_dtype",
                         "vmem_limit_bytes"),
    )

    # Default fast path: bf16 matmuls with f32 accumulation — loose tolerance.
    out = jax.block_until_ready(ffn(x, w1, b1, w2, b2))
    assert out.shape == (batch, seq, d_out)
    assert bool(jnp.all(jnp.isfinite(out)))
    assert jnp.allclose(out, ref, atol=1e-1, rtol=1e-1), "bf16 mismatch vs. reference"

    # Exact f32 path (matches the PyTorch module numerics) — tight tolerance.
    out_f32 = jax.block_until_ready(ffn(x, w1, b1, w2, b2, matmul_dtype=jnp.float32))
    assert out_f32.shape == (batch, seq, d_out)
    assert jnp.allclose(out_f32, ref, atol=1e-4, rtol=1e-4), "f32 mismatch vs. reference"

    print("KERNEL_OK")
</pallas_src>

<mosaic_0001>
module attributes {stable_mosaic.version = 11 : i64} {
  func.func @_ffn_kernel(%arg0: i32, %arg1: memref<16x32xf32, #tpu.memory_space<vmem>>, %arg2: memref<32x64xbf16, #tpu.memory_space<vmem>>, %arg3: memref<1x64xf32, #tpu.memory_space<vmem>>, %arg4: memref<64x32xbf16, #tpu.memory_space<vmem>>, %arg5: memref<1x32xf32, #tpu.memory_space<vmem>>, %arg6: memref<16x32xf32, #tpu.memory_space<vmem>>) attributes {dimension_semantics = [#tpu.dimension_semantics<parallel>], iteration_bounds = array<i64: 1>, scalar_prefetch = 0 : i64, scratch_operands = 0 : i64, tpu.core_type = #tpu.core_type<tc>, window_params = [{transform_indices = @transform_0, window_bounds = array<i64: 16, 32>}, {pipeline_mode = #tpu.pipeline_mode<synchronous>, transform_indices = @transform_1, window_bounds = array<i64: 32, 64>}, {pipeline_mode = #tpu.pipeline_mode<synchronous>, transform_indices = @transform_2, window_bounds = array<i64: 1, 64>}, {pipeline_mode = #tpu.pipeline_mode<synchronous>, transform_indices = @transform_3, window_bounds = array<i64: 64, 32>}, {pipeline_mode = #tpu.pipeline_mode<synchronous>, transform_indices = @transform_4, window_bounds = array<i64: 1, 32>}, {transform_indices = @transform_5, window_bounds = array<i64: 16, 32>}]} {
    %c0 = arith.constant 0 : index
    %c0_0 = arith.constant 0 : index
    %0 = vector.load %arg1[%c0, %c0_0] : memref<16x32xf32, #tpu.memory_space<vmem>>, vector<16x32xf32>
    %1 = arith.truncf %0 : vector<16x32xf32> to vector<16x32xbf16>
    %c0_1 = arith.constant 0 : index
    %c0_2 = arith.constant 0 : index
    %2 = vector.load %arg2[%c0_1, %c0_2] : memref<32x64xbf16, #tpu.memory_space<vmem>>, vector<32x64xbf16>
    %cst = arith.constant dense<0.000000e+00> : vector<16x64xf32>
    %3 = tpu.matmul %1, %2, %cst {dimension_numbers = #tpu.dot_dimension_numbers<[1], [0], [0], [1], [0, 0, 1, 1], [], []>} : vector<16x32xbf16>, vector<32x64xbf16>, vector<16x64xf32> -> vector<16x64xf32>
    %c0_3 = arith.constant 0 : index
    %c0_4 = arith.constant 0 : index
    %4 = vector.load %arg3[%c0_3, %c0_4] : memref<1x64xf32, #tpu.memory_space<vmem>>, vector<1x64xf32>
    %5 = vector.broadcast %4 : vector<1x64xf32> to vector<16x64xf32>
    %6 = arith.addf %3, %5 : vector<16x64xf32>
    %cst_5 = arith.constant 5.000000e-01 : f32
    %7 = vector.broadcast %cst_5 : f32 to vector<16x64xf32>
    %8 = arith.mulf %7, %6 : vector<16x64xf32>
    %cst_6 = arith.constant 4.471500e-02 : f32
    %9 = vector.broadcast %cst_6 : f32 to vector<16x64xf32>
    %10 = arith.mulf %9, %6 : vector<16x64xf32>
    %11 = arith.mulf %10, %6 : vector<16x64xf32>
    %12 = arith.mulf %11, %6 : vector<16x64xf32>
    %13 = arith.addf %6, %12 : vector<16x64xf32>
    %cst_7 = arith.constant 0.797884583 : f32
    %14 = vector.broadcast %cst_7 : f32 to vector<16x64xf32>
    %15 = arith.mulf %14, %13 : vector<16x64xf32>
    %16 = math.tanh %15 : vector<16x64xf32>
    %cst_8 = arith.constant 1.000000e+00 : f32
    %17 = vector.broadcast %cst_8 : f32 to vector<16x64xf32>
    %18 = arith.addf %17, %16 : vector<16x64xf32>
    %19 = arith.mulf %8, %18 : vector<16x64xf32>
    %20 = arith.truncf %19 : vector<16x64xf32> to vector<16x64xbf16>
    %c0_9 = arith.constant 0 : index
    %c0_10 = arith.constant 0 : index
    %21 = vector.load %arg4[%c0_9, %c0_10] : memref<64x32xbf16, #tpu.memory_space<vmem>>, vector<64x32xbf16>
    %cst_11 = arith.constant dense<0.000000e+00> : vector<16x32xf32>
    %22 = tpu.matmul %20, %21, %cst_11 {dimension_numbers = #tpu.dot_dimension_numbers<[1], [0], [0], [1], [0, 0, 1, 1], [], []>} : vector<16x64xbf16>, vector<64x32xbf16>, vector<16x32xf32> -> vector<16x32xf32>
    %c0_12 = arith.constant 0 : index
    %c0_13 = arith.constant 0 : index
    %23 = vector.load %arg5[%c0_12, %c0_13] : memref<1x32xf32, #tpu.memory_space<vmem>>, vector<1x32xf32>
    %24 = vector.broadcast %23 : vector<1x32xf32> to vector<16x32xf32>
    %25 = arith.addf %22, %24 : vector<16x32xf32>
    %c0_14 = arith.constant 0 : index
    %c0_15 = arith.constant 0 : index
    %26 = vector.load %arg6[%c0_14, %c0_15] : memref<16x32xf32, #tpu.memory_space<vmem>>, vector<16x32xf32>
    tpu.vector_store %arg6[%c0_14, %c0_15], %25 {strides = array<i32>} : memref<16x32xf32, #tpu.memory_space<vmem>>, vector<16x32xf32>,
    return
  }
  func.func @transform_0(%arg0: i32) -> (i32, i32) {
    %c0_i32 = arith.constant 0 : i32
    %c0_i32_0 = arith.constant 0 : i32
    return %arg0, %c0_i32 : i32, i32
  }
  func.func @transform_1(%arg0: i32) -> (i32, i32) {
    %c0_i32 = arith.constant 0 : i32
    %c0_i32_0 = arith.constant 0 : i32
    %c0_i32_1 = arith.constant 0 : i32
    return %c0_i32, %c0_i32_0 : i32, i32
  }
  func.func @transform_2(%arg0: i32) -> (i32, i32) {
    %c0_i32 = arith.constant 0 : i32
    %c0_i32_0 = arith.constant 0 : i32
    %c0_i32_1 = arith.constant 0 : i32
    return %c0_i32, %c0_i32_0 : i32, i32
  }
  func.func @transform_3(%arg0: i32) -> (i32, i32) {
    %c0_i32 = arith.constant 0 : i32
    %c0_i32_0 = arith.constant 0 : i32
    %c0_i32_1 = arith.constant 0 : i32
    return %c0_i32, %c0_i32_0 : i32, i32
  }
  func.func @transform_4(%arg0: i32) -> (i32, i32) {
    %c0_i32 = arith.constant 0 : i32
    %c0_i32_0 = arith.constant 0 : i32
    %c0_i32_1 = arith.constant 0 : i32
    return %c0_i32, %c0_i32_0 : i32, i32
  }
  func.func @transform_5(%arg0: i32) -> (i32, i32) {
    %c0_i32 = arith.constant 0 : i32
    %c0_i32_0 = arith.constant 0 : i32
    return %arg0, %c0_i32 : i32, i32
  }
}

</mosaic_0001>

<llo_original>
// kernel: feed_forward_interaction.1
$region0: #{feed_forward_interaction.1}
  #allocation0 [shape = 'u32[]', space=smem, size = 0x4, offset = 0x4, fixed_abs, tag = 'smem constant byte address 0x4 - core index']
  #allocation1 [shape = 'u32[144,128]{1,0:T(1,128)}', space=vmem, size = 0x12000, scoped, tag = 'internal scratch']
  %s0 = inlined_call_operand.vmem [shape: f32[16,32], index: 0, kind: input, shape index: {}]
  %s1 = inlined_call_operand.vmem [shape: bf16[32,64], index: 1, kind: input, shape index: {}]
  %s2 = inlined_call_operand.vmem [shape: f32[1,64], index: 2, kind: input, shape index: {}]
  %s3 = inlined_call_operand.vmem [shape: bf16[64,32], index: 3, kind: input, shape index: {}]
  %s4 = inlined_call_operand.vmem [shape: f32[1,32], index: 4, kind: input, shape index: {}]
  %s5 = inlined_call_operand.hbm [shape: f32[16,32], index: 5, kind: output, shape index: {}]
  %s6 = sld [smem:[#allocation0]]
  $region30: #{feed_forward_interaction.1} parent=0
    _
  %s8 = ssub.s32 1, %s6
  %s9 = scalar_select 0, %s8, %s6
  $region1: #{feed_forward_interaction.1} parent=0
    #allocation2 [shape = 'u8[8192]{0}', space=vmem, size = 0x2000, scoped, tag = 'output window, operand 0, single buffered']
    #allocation3 [shape = 's32[1]{0}', space=sflag, size = 0x4, scoped, tag = 'scoped memory for feed_forward_interaction.1']
    %10 = vsyncpa [#allocation3], 0
    // Predicated region
    $region2: #{feed_forward_interaction.1} parent=1 // pred_check
      _
    $region3: #{feed_forward_interaction.1} parent=1 // pred_check_branch
      %12 = sbr.rel (0) target = $region5
    $region4: #{feed_forward_interaction.1} parent=1 // pred_region
      _
    $region5: #{feed_forward_interaction.1} parent=1 // pred_fallthru
      _
    // Predicated region
    $region6: #{feed_forward_interaction.1} parent=1 // pred_check
      _
    $region7: #{feed_forward_interaction.1} parent=1 // pred_check_branch
      %14 = sbr.rel (0) target = $region9
    $region8: #{feed_forward_interaction.1} parent=1 // pred_region
      _
    $region9: #{feed_forward_interaction.1} parent=1 // pred_fallthru
      _
    // Predicated region
    $region10: #{feed_forward_interaction.1} parent=1 // pred_check
      _
    $region11: #{feed_forward_interaction.1} parent=1 // pred_check_branch
      %16 = sbr.rel (0) target = $region13
    $region12: #{feed_forward_interaction.1} parent=1 // pred_region
      _
    $region13: #{feed_forward_interaction.1} parent=1 // pred_fallthru
      _
    // Predicated region
    $region14: #{feed_forward_interaction.1} parent=1 // pred_check
      _
    $region15: #{feed_forward_interaction.1} parent=1 // pred_check_branch
      %18 = sbr.rel (0) target = $region17
    $region16: #{feed_forward_interaction.1} parent=1 // pred_region
      _
    $region17: #{feed_forward_interaction.1} parent=1 // pred_fallthru
      _
    // Predicated region
    $region18: #{feed_forward_interaction.1} parent=1 // pred_check
      _
    $region19: #{feed_forward_interaction.1} parent=1 // pred_check_branch
      %20 = sbr.rel (0) target = $region21
    $region20: #{feed_forward_interaction.1} parent=1 // pred_region
      _
    $region21: #{feed_forward_interaction.1} parent=1 // pred_fallthru
      _
    %v22 = vld [vmem:[%s0] sm:$0xff]
    %v23 = vld [vmem:[%s0 + $0x8] sm:$0xff]
    %v24 = vpack.c.bf16 %v23, %v22
    %v25 = vld [vmem:[%s1] sm:$0xf]
    %v26 = vld [vmem:[%s1 + $0x4] sm:$0xf]
    %v27 = vld [vmem:[%s1 + $0x8] sm:$0xf]
    %v28 = vld [vmem:[%s1 + $0xc] sm:$0xf]
    %v29 = vld [vmem:[%s2] sm:$0x1]
    %v31 = vlaneseq
    %v32 = vshrl.u32 %v31, 7
    %v33 = vsub.s32 0, %v32
    %v34 = vrot.slane %v29, %v33
    %v40 = vunpack.c.l.b16 %v25
    %v41 = vunpack.c.l.b16 %v26
    %v42 = vunpack.c.l.b16 %v27
    %v43 = vunpack.c.l.b16 %v28
    %v44 = vpack.c.b16 %v41, %v40
    %v45 = vpack.c.b16 %v43, %v42
    %vm48 = vcmask 261120
    %v50 = vsel %vm48, %v24, 0
    %52 = vmatprep.subr.bf16.mxu0 0
    %53 = vmatpush1.bf16.msra.mxu0 %v44
    %54 = vmatprep.subr.bf16.mxu0 0
    %55 = vmatpush1.bf16.msra.mxu0 %v45
    %56 = vmatprep.subr.bf16.mxu0 0
    %57 = vmatpush1.bf16.msra.mxu0 0
    %58 = vmatprep.subr.bf16.mxu0 0
    %59 = vmatpush1.bf16.msra.mxu0 0
    %60 = vmatprep.subr.bf16.mxu0 0
    %61 = vmatpush1.bf16.msra.mxu0 0
    %62 = vmatprep.subr.bf16.mxu0 0
    %63 = vmatpush1.bf16.msra.mxu0 0
    %64 = vmatprep.subr.bf16.mxu0 0
    %65 = vmatpush1.bf16.msra.mxu0 0
    %66 = vmatprep.subr.bf16.mxu0 0
    %67 = vmatpush1.bf16.msra.mxu0 0
    %68 = vmatprep.subr.bf16.mxu0 0
    %69 = vmatpush1.bf16.msra.mxu0 0
    %70 = vmatprep.subr.bf16.mxu0 0
    %71 = vmatpush1.bf16.msra.mxu0 0
    %72 = vmatprep.subr.bf16.mxu0 0
    %73 = vmatpush1.bf16.msra.mxu0 0
    %74 = vmatprep.subr.bf16.mxu0 0
    %75 = vmatpush1.bf16.msra.mxu0 0
    %76 = vmatprep.subr.bf16.mxu0 0
    %77 = vmatpush1.bf16.msra.mxu0 0
    %78 = vmatprep.subr.bf16.mxu0 0
    %79 = vmatpush1.bf16.msra.mxu0 0
    %80 = vmatprep.subr.bf16.mxu0 0
    %81 = vmatpush1.bf16.msra.mxu0 0
    %82 = vmatprep.subr.bf16.mxu0 0
    %83 = vmatpush1.bf16.msra.mxu0 0
    %84 = vmatprep.mubr.bf16.mxu0 0
    %85 = vmatmul.mubr.bf16.gmra.mrb[0].mxu0 %v50
    %v86 = vpop.f32.mrb[0].mxu0
    %v87 = vadd.f32 %v34, %v86
    %v88 = vpop.f32.mrb[0].mxu0
    %v89 = vpop.f32.mrb[0].mxu0
    %v90 = vadd.f32 %v34, %v89
    %v91 = vpop.f32.mrb[0].mxu0
    %92 = vdwg.mxu0
    %v93 = vmul.f32 %v87, 0.5
    %v94 = vmul.f32 %v90, 0.5
    %v95 = vmul.f32 %v87, 0.044715
    %v96 = vmul.f32 %v90, 0.044715
    %v97 = vmul.f32 %v95, %v87
    %v98 = vmul.f32 %v96, %v90
    %v99 = vmul.f32 %v97, %v87
    %v100 = vmul.f32 %v98, %v90
    %v101 = vadd.f32 %v87, %v99
    %v102 = vadd.f32 %v90, %v100
    %v103 = vmul.f32 %v101, 0.7978846
    %v104 = vmul.f32 %v102, 0.7978846
    %v105 = vtanh.pop %v103
    %v106 = vtanh.pop %v104
    %v107 = vadd.f32 %v105, 1.0
    %v108 = vadd.f32 %v106, 1.0
    %v109 = vmul.f32 %v93, %v107
    %v110 = vmul.f32 %v94, %v108
    %v111 = vpack.c.bf16 %v110, %v109
    %v112 = vld [vmem:[%s3] sm:$0xf]
    %v113 = vld [vmem:[%s3 + $0x4] sm:$0xf]
    %v114 = vld [vmem:[%s3 + $0x8] sm:$0xf]
    %v115 = vld [vmem:[%s3 + $0xc] sm:$0xf]
    %v116 = vld [vmem:[%s3 + $0x10] sm:$0xf]
    %v117 = vld [vmem:[%s3 + $0x14] sm:$0xf]
    %v118 = vld [vmem:[%s3 + $0x18] sm:$0xf]
    %v119 = vld [vmem:[%s3 + $0x1c] sm:$0xf]
    %v120 = vld [vmem:[%s4] sm:$0x1]
    %v122 = vlaneseq
    %v123 = vshrl.u32 %v122, 7
    %v124 = vsub.s32 0, %v123
    %v125 = vrot.slane %v120, %v124
    %v135 = vunpack.c.l.b16 %v112
    %v136 = vunpack.c.l.b16 %v113
    %v137 = vunpack.c.l.b16 %v114
    %v138 = vunpack.c.l.b16 %v115
    %v139 = vunpack.c.l.b16 %v116
    %v140 = vunpack.c.l.b16 %v117
    %v141 = vunpack.c.l.b16 %v118
    %v142 = vunpack.c.l.b16 %v119
    %v143 = vpack.c.b16 %v136, %v135
    %v144 = vpack.c.b16 %v138, %v137
    %v145 = vpack.c.b16 %v140, %v139
    %v146 = vpack.c.b16 %v142, %v141
    %vm151 = vcmask 523264
    %v153 = vsel %vm151, %v111, 0
    %155 = vmatprep.subr.bf16.mxu0 0
    %156 = vmatpush1.bf16.msra.mxu0 %v143
    %157 = vmatprep.subr.bf16.mxu0 0
    %158 = vmatpush1.bf16.msra.mxu0 %v144
    %159 = vmatprep.subr.bf16.mxu0 0
    %160 = vmatpush1.bf16.msra.mxu0 %v145
    %161 = vmatprep.subr.bf16.mxu0 0
    %162 = vmatpush1.bf16.msra.mxu0 %v146
    %163 = vmatprep.subr.bf16.mxu0 0
    %164 = vmatpush1.bf16.msra.mxu0 0
    %165 = vmatprep.subr.bf16.mxu0 0
    %166 = vmatpush1.bf16.msra.mxu0 0
    %167 = vmatprep.subr.bf16.mxu0 0
    %168 = vmatpush1.bf16.msra.mxu0 0
    %169 = vmatprep.subr.bf16.mxu0 0
    %170 = vmatpush1.bf16.msra.mxu0 0
    %171 = vmatprep.subr.bf16.mxu0 0
    %172 = vmatpush1.bf16.msra.mxu0 0
    %173 = vmatprep.subr.bf16.mxu0 0
    %174 = vmatpush1.bf16.msra.mxu0 0
    %175 = vmatprep.subr.bf16.mxu0 0
    %176 = vmatpush1.bf16.msra.mxu0 0
    %177 = vmatprep.subr.bf16.mxu0 0
    %178 = vmatpush1.bf16.msra.mxu0 0
    %179 = vmatprep.subr.bf16.mxu0 0
    %180 = vmatpush1.bf16.msra.mxu0 0
    %181 = vmatprep.subr.bf16.mxu0 0
    %182 = vmatpush1.bf16.msra.mxu0 0
    %183 = vmatprep.subr.bf16.mxu0 0
    %184 = vmatpush1.bf16.msra.mxu0 0
    %185 = vmatprep.subr.bf16.mxu0 0
    %186 = vmatpush1.bf16.msra.mxu0 0
    %187 = vmatprep.mubr.bf16.mxu0 0
    %188 = vmatmul.mubr.bf16.gmra.mrb[0].mxu0 %v153
    %v189 = vpop.f32.mrb[0].mxu0
    %v190 = vadd.f32 %v125, %v189
    %v191 = vpop.f32.mrb[0].mxu0
    %v192 = vpop.f32.mrb[0].mxu0
    %v193 = vadd.f32 %v125, %v192
    %v194 = vpop.f32.mrb[0].mxu0
    %195 = vdwg.mxu0
    %196 = vst.msk [vmem:[#allocation2] sm:$0xff] %vm48, %v190
    %197 = vst.msk [vmem:[#allocation2 + $0x8] sm:$0xff] %vm48, %v193
    // Predicated region
    $region22: #{feed_forward_interaction.1} parent=1 // pred_check
      _
    $region23: #{feed_forward_interaction.1} parent=1 // pred_check_branch
      %199 = sbr.rel (0) target = $region25
    $region24: #{feed_forward_interaction.1} parent=1 // pred_region
      %s201 = ssub.s32 256, 256
      %202 = vsyncadd [#allocation3], %s201
      %s203 = sshll.u32 [#allocation2], 4
      %s204 = int_to_ptr.vmem [resolvable:$true] %s203
      %209 = dma.vmem_to_hbm [thread:$0]  %s204, 256, %s5, [#allocation3], 128, 128, 8
    $region25: #{feed_forward_interaction.1} parent=1 // pred_fallthru
      _
    // Predicated region
    $region26: #{feed_forward_interaction.1} parent=1 // pred_check
      _
    $region27: #{feed_forward_interaction.1} parent=1 // pred_check_branch
      %211 = sbr.rel (0) target = $region29
    $region28: #{feed_forward_interaction.1} parent=1 // pred_region
      %212 = dma.done [#allocation3], 256
    $region29: #{feed_forward_interaction.1} parent=1 // pred_fallthru
      _
    %213 = vsyncpa [#allocation3], 1

</llo_original>
